<compile_context>
chip_gen: v7x
topology: tpu7x:2x2x1
jax: 0.10.0
libtpu: 0.0.40
codegen_flags: <defaults>
</compile_context>

<pallas_src>
import jax
import jax.numpy as jnp
from jax import lax
from jax.experimental import pallas as pl
from jax.experimental.pallas import tpu as pltpu

INPUT_SIZE = 14
HIDDEN_SIZES = [64, 32]
NUM_CLASSES = 4

# Contract the last dim of both operands: A[m,k] x B[n,k] -> [m,n].
_NT_DIMS = (((1,), (1,)), ((), ()))


def _round_up(n, m):
    return ((n + m - 1) // m) * m


def _choose_tile(batch, tile_b):
    """Pick the batch tile.

    - If the whole batch fits in one tile, use the exact batch size (block ==
      full array: always layout-legal, zero padding/waste).
    - Otherwise use a multiple of 128 (lane-dense output blocks), aiming for
      >= ~8 grid steps at large batch (pipelining + v7x dual-TC sharding) but
      never below ~2048 rows so per-step DMA stays well above the fixed
      per-grid-step overhead.
    """
    tile_b = max(128, _round_up(tile_b, 128))
    tile = min(tile_b, max(_round_up(pl.cdiv(batch, 8), 128),
                           min(2048, _round_up(batch, 128))))
    if batch <= tile:
        return batch
    return tile


def mlp_kernel(x_ref, w1_ref, b1_ref, w2_ref, b2_ref, w3_ref, b3_ref, o_ref):
    # x_ref: [TILE_B, INPUT_SIZE] block of the row-major x (contiguous HBM
    # read).  All compute keeps the batch in the lane dimension:
    #   out = sigmoid(W3 @ relu(W2 @ relu(W1 @ X^T + b1) + b2) + b3)
    x = x_ref[...]                                              # (TILE_B, 14)

    # Layer 1: Linear(14 -> 64) + ReLU -> (64, TILE_B).
    # NT matmul: contract the 14-wide feature dim of both operands (compiler
    # masks the non-aligned K); avoids any wrapper-side transpose of x.
    h1 = lax.dot_general(w1_ref[...], x, _NT_DIMS,
                         preferred_element_type=jnp.float32)
    h1 = jnp.maximum(h1 + b1_ref[...], 0.0)

    # Layer 2: Linear(64 -> 32) + ReLU -> (32, TILE_B)
    h2 = jnp.dot(w2_ref[...], h1, preferred_element_type=jnp.float32)
    h2 = jnp.maximum(h2 + b2_ref[...], 0.0)

    # Layer 3: Linear(32 -> 4) + Sigmoid -> (4, TILE_B), lane-dense store.
    logits = jnp.dot(w3_ref[...], h2, preferred_element_type=jnp.float32)
    logits = logits + b3_ref[...]
    o_ref[...] = jax.nn.sigmoid(logits).astype(o_ref.dtype)


def mlp_forward(x, params, tile_b=8192):
    """x: [B, INPUT_SIZE] f32 (torch layout). params: [(W[out,in], b[out,1]) x 3]."""
    (w1, b1), (w2, b2), (w3, b3) = params
    B = x.shape[0]

    tile = _choose_tile(B, tile_b)
    grid = (pl.cdiv(B, tile),)          # ragged last tile is masked by Pallas

    def const_spec(a):
        # Full-array block, constant index map -> stays VMEM-resident.
        return pl.BlockSpec(a.shape, lambda i: (0,) * a.ndim)

    flops = 2 * B * (INPUT_SIZE * 64 + 64 * 32 + 32 * NUM_CLASSES)
    bytes_accessed = 4 * (
        B * (INPUT_SIZE + NUM_CLASSES)                       # x + out streams
        + 64 * INPUT_SIZE + 32 * 64 + NUM_CLASSES * 32       # weights
        + 64 + 32 + NUM_CLASSES                              # biases
    )

    out_t = pl.pallas_call(
        mlp_kernel,
        out_shape=jax.ShapeDtypeStruct((NUM_CLASSES, B), jnp.float32),
        grid=grid,
        in_specs=[
            pl.BlockSpec((tile, INPUT_SIZE), lambda i: (i, 0)),  # streamed x
            const_spec(w1), const_spec(b1),
            const_spec(w2), const_spec(b2),
            const_spec(w3), const_spec(b3),
        ],
        out_specs=pl.BlockSpec((NUM_CLASSES, tile), lambda i: (0, i)),
        compiler_params=pltpu.CompilerParams(
            # Batch tiles are independent: shard across TensorCores on v7x.
            dimension_semantics=("parallel",),
            # Explicit scoped-VMEM budget: ~15 MiB live at tile=8192 (x block
            # pads 14->128 lanes), which overflows v5e's 16 MiB default.
            vmem_limit_bytes=32 * 1024 * 1024,
        ),
        cost_estimate=pl.CostEstimate(
            flops=flops,
            transcendentals=B * NUM_CLASSES,     # sigmoid
            bytes_accessed=bytes_accessed,
        ),
    )(x, w1, b1, w2, b2, w3, b3)

    # Only the tiny [4, B] output gets a wrapper-side transpose back to [B, 4];
    # x itself is never re-laid-out in HBM.
    return jnp.transpose(out_t)


def init_linear(key, in_features, out_features):
    # torch.nn.Linear default init: U(-1/sqrt(in), 1/sqrt(in)), torch-native [out, in].
    kw, kb = jax.random.split(key)
    bound = 1.0 / jnp.sqrt(jnp.float32(in_features))
    w = jax.random.uniform(kw, (out_features, in_features), jnp.float32, -bound, bound)
    b = jax.random.uniform(kb, (out_features, 1), jnp.float32, -bound, bound)
    return w, b


def make_params(key):
    sizes = [INPUT_SIZE] + HIDDEN_SIZES + [NUM_CLASSES]
    keys = jax.random.split(key, len(sizes) - 1)
    return [init_linear(k, i, o) for k, i, o in zip(keys, sizes[:-1], sizes[1:])]


def reference_forward(x, params):
    h = x
    for i, (w, b) in enumerate(params):
        h = jnp.dot(h, w.T, precision=lax.Precision.HIGHEST) + b.reshape(1, -1)
        if i < len(params) - 1:
            h = jnp.maximum(h, 0.0)
    return jax.nn.sigmoid(h)


if __name__ == "__main__":
    key = jax.random.PRNGKey(0)
    k_params, k_x = jax.random.split(key)

    params = make_params(k_params)

    # Small deterministic batch; single exact-shape tile path.
    B = 200
    x = jax.random.normal(k_x, (B, INPUT_SIZE), jnp.float32)
    out = jax.block_until_ready(mlp_forward(x, params))
    ref = reference_forward(x, params)
    assert out.shape == (B, NUM_CLASSES)
    # Kernel uses default MXU precision vs. HIGHEST-precision reference.
    assert jnp.allclose(out, ref, atol=5e-3, rtol=5e-3)

    # Tiny batch (single block == full array).
    x2 = jax.random.normal(jax.random.PRNGKey(1), (8, INPUT_SIZE), jnp.float32)
    out2 = jax.block_until_ready(mlp_forward(x2, params))
    assert jnp.allclose(out2, reference_forward(x2, params), atol=5e-3, rtol=5e-3)

    # Multi-tile path with a ragged last tile (tile forced small for the test).
    x3 = jax.random.normal(jax.random.PRNGKey(2), (300, INPUT_SIZE), jnp.float32)
    out3 = jax.block_until_ready(mlp_forward(x3, params, tile_b=128))
    assert jnp.allclose(out3, reference_forward(x3, params), atol=5e-3, rtol=5e-3)

    print("KERNEL_OK")
</pallas_src>

<mosaic_0001>
module attributes {stable_mosaic.version = 11 : i64} {
  func.func @mlp_kernel(%arg0: i32, %arg1: memref<200x14xf32, #tpu.memory_space<vmem>>, %arg2: memref<64x14xf32, #tpu.memory_space<vmem>>, %arg3: memref<64x1xf32, #tpu.memory_space<vmem>>, %arg4: memref<32x64xf32, #tpu.memory_space<vmem>>, %arg5: memref<32x1xf32, #tpu.memory_space<vmem>>, %arg6: memref<4x32xf32, #tpu.memory_space<vmem>>, %arg7: memref<4x1xf32, #tpu.memory_space<vmem>>, %arg8: memref<4x200xf32, #tpu.memory_space<vmem>>) attributes {dimension_semantics = [#tpu.dimension_semantics<parallel>], iteration_bounds = array<i64: 1>, scalar_prefetch = 0 : i64, scratch_operands = 0 : i64, tpu.core_type = #tpu.core_type<tc>, window_params = [{transform_indices = @transform_0, window_bounds = array<i64: 200, 14>}, {pipeline_mode = #tpu.pipeline_mode<synchronous>, transform_indices = @transform_1, window_bounds = array<i64: 64, 14>}, {pipeline_mode = #tpu.pipeline_mode<synchronous>, transform_indices = @transform_2, window_bounds = array<i64: 64, 1>}, {pipeline_mode = #tpu.pipeline_mode<synchronous>, transform_indices = @transform_3, window_bounds = array<i64: 32, 64>}, {pipeline_mode = #tpu.pipeline_mode<synchronous>, transform_indices = @transform_4, window_bounds = array<i64: 32, 1>}, {pipeline_mode = #tpu.pipeline_mode<synchronous>, transform_indices = @transform_5, window_bounds = array<i64: 4, 32>}, {pipeline_mode = #tpu.pipeline_mode<synchronous>, transform_indices = @transform_6, window_bounds = array<i64: 4, 1>}, {transform_indices = @transform_7, window_bounds = array<i64: 4, 200>}]} {
    %c0 = arith.constant 0 : index
    %c0_0 = arith.constant 0 : index
    %0 = vector.load %arg1[%c0, %c0_0] : memref<200x14xf32, #tpu.memory_space<vmem>>, vector<200x14xf32>
    %c0_1 = arith.constant 0 : index
    %c0_2 = arith.constant 0 : index
    %1 = vector.load %arg2[%c0_1, %c0_2] : memref<64x14xf32, #tpu.memory_space<vmem>>, vector<64x14xf32>
    %cst = arith.constant dense<0.000000e+00> : vector<64x200xf32>
    %2 = tpu.matmul %1, %0, %cst {dimension_numbers = #tpu.dot_dimension_numbers<[1], [1], [0], [0], [0, 0, 1, 0], [], []>} : vector<64x14xf32>, vector<200x14xf32>, vector<64x200xf32> -> vector<64x200xf32>
    %c0_3 = arith.constant 0 : index
    %c0_4 = arith.constant 0 : index
    %3 = vector.load %arg3[%c0_3, %c0_4] : memref<64x1xf32, #tpu.memory_space<vmem>>, vector<64x1xf32>
    %4 = vector.broadcast %3 : vector<64x1xf32> to vector<64x200xf32>
    %5 = arith.addf %2, %4 : vector<64x200xf32>
    %cst_5 = arith.constant 0.000000e+00 : f32
    %6 = vector.broadcast %cst_5 : f32 to vector<64x200xf32>
    %7 = arith.maximumf %5, %6 : vector<64x200xf32>
    %c0_6 = arith.constant 0 : index
    %c0_7 = arith.constant 0 : index
    %8 = vector.load %arg4[%c0_6, %c0_7] : memref<32x64xf32, #tpu.memory_space<vmem>>, vector<32x64xf32>
    %cst_8 = arith.constant dense<0.000000e+00> : vector<32x200xf32>
    %9 = tpu.matmul %8, %7, %cst_8 {dimension_numbers = #tpu.dot_dimension_numbers<[1], [0], [0], [1], [0, 0, 1, 1], [], []>} : vector<32x64xf32>, vector<64x200xf32>, vector<32x200xf32> -> vector<32x200xf32>
    %c0_9 = arith.constant 0 : index
    %c0_10 = arith.constant 0 : index
    %10 = vector.load %arg5[%c0_9, %c0_10] : memref<32x1xf32, #tpu.memory_space<vmem>>, vector<32x1xf32>
    %11 = vector.broadcast %10 : vector<32x1xf32> to vector<32x200xf32>
    %12 = arith.addf %9, %11 : vector<32x200xf32>
    %cst_11 = arith.constant 0.000000e+00 : f32
    %13 = vector.broadcast %cst_11 : f32 to vector<32x200xf32>
    %14 = arith.maximumf %12, %13 : vector<32x200xf32>
    %c0_12 = arith.constant 0 : index
    %c0_13 = arith.constant 0 : index
    %15 = vector.load %arg6[%c0_12, %c0_13] : memref<4x32xf32, #tpu.memory_space<vmem>>, vector<4x32xf32>
    %cst_14 = arith.constant dense<0.000000e+00> : vector<4x200xf32>
    %16 = tpu.matmul %15, %14, %cst_14 {dimension_numbers = #tpu.dot_dimension_numbers<[1], [0], [0], [1], [0, 0, 1, 1], [], []>} : vector<4x32xf32>, vector<32x200xf32>, vector<4x200xf32> -> vector<4x200xf32>
    %c0_15 = arith.constant 0 : index
    %c0_16 = arith.constant 0 : index
    %17 = vector.load %arg7[%c0_15, %c0_16] : memref<4x1xf32, #tpu.memory_space<vmem>>, vector<4x1xf32>
    %18 = vector.broadcast %17 : vector<4x1xf32> to vector<4x200xf32>
    %19 = arith.addf %16, %18 : vector<4x200xf32>
    %20 = arith.negf %19 : vector<4x200xf32>
    %21 = math.exp %20 : vector<4x200xf32>
    %cst_17 = arith.constant 1.000000e+00 : f32
    %22 = vector.broadcast %cst_17 : f32 to vector<4x200xf32>
    %23 = arith.addf %22, %21 : vector<4x200xf32>
    %24 = arith.divf %22, %23 : vector<4x200xf32>
    %c0_18 = arith.constant 0 : index
    %c0_19 = arith.constant 0 : index
    %25 = vector.load %arg8[%c0_18, %c0_19] : memref<4x200xf32, #tpu.memory_space<vmem>>, vector<4x200xf32>
    tpu.vector_store %arg8[%c0_18, %c0_19], %24 {strides = array<i32>} : memref<4x200xf32, #tpu.memory_space<vmem>>, vector<4x200xf32>,
    return
  }
  func.func @transform_0(%arg0: i32) -> (i32, i32) {
    %c0_i32 = arith.constant 0 : i32
    %c0_i32_0 = arith.constant 0 : i32
    return %arg0, %c0_i32 : i32, i32
  }
  func.func @transform_1(%arg0: i32) -> (i32, i32) {
    %c0_i32 = arith.constant 0 : i32
    %c0_i32_0 = arith.constant 0 : i32
    %c0_i32_1 = arith.constant 0 : i32
    return %c0_i32, %c0_i32_0 : i32, i32
  }
  func.func @transform_2(%arg0: i32) -> (i32, i32) {
    %c0_i32 = arith.constant 0 : i32
    %c0_i32_0 = arith.constant 0 : i32
    %c0_i32_1 = arith.constant 0 : i32
    return %c0_i32, %c0_i32_0 : i32, i32
  }
  func.func @transform_3(%arg0: i32) -> (i32, i32) {
    %c0_i32 = arith.constant 0 : i32
    %c0_i32_0 = arith.constant 0 : i32
    %c0_i32_1 = arith.constant 0 : i32
    return %c0_i32, %c0_i32_0 : i32, i32
  }
  func.func @transform_4(%arg0: i32) -> (i32, i32) {
    %c0_i32 = arith.constant 0 : i32
    %c0_i32_0 = arith.constant 0 : i32
    %c0_i32_1 = arith.constant 0 : i32
    return %c0_i32, %c0_i32_0 : i32, i32
  }
  func.func @transform_5(%arg0: i32) -> (i32, i32) {
    %c0_i32 = arith.constant 0 : i32
    %c0_i32_0 = arith.constant 0 : i32
    %c0_i32_1 = arith.constant 0 : i32
    return %c0_i32, %c0_i32_0 : i32, i32
  }
  func.func @transform_6(%arg0: i32) -> (i32, i32) {
    %c0_i32 = arith.constant 0 : i32
    %c0_i32_0 = arith.constant 0 : i32
    %c0_i32_1 = arith.constant 0 : i32
    return %c0_i32, %c0_i32_0 : i32, i32
  }
  func.func @transform_7(%arg0: i32) -> (i32, i32) {
    %c0_i32 = arith.constant 0 : i32
    %c0_i32_0 = arith.constant 0 : i32
    return %c0_i32, %arg0 : i32, i32
  }
}

</mosaic_0001>

<llo_original>
// kernel: tpu_custom_call.1
$region0: #{tpu_custom_call.1}
  #allocation0 [shape = 'u32[]', space=smem, size = 0x4, offset = 0x4, fixed_abs, tag = 'smem constant byte address 0x4 - core index']
  #allocation1 [shape = 'u32[144,128]{1,0:T(1,128)}', space=vmem, size = 0x12000, scoped, tag = 'internal scratch']
  %s0 = inlined_call_operand.vmem [shape: f32[200,14], index: 0, kind: input, shape index: {}]
  %s1 = inlined_call_operand.vmem [shape: f32[64,14], index: 1, kind: input, shape index: {}]
  %s2 = inlined_call_operand.vmem [shape: f32[64,1], index: 2, kind: input, shape index: {}]
  %s3 = inlined_call_operand.vmem [shape: f32[32,64], index: 3, kind: input, shape index: {}]
  %s4 = inlined_call_operand.vmem [shape: f32[32,1], index: 4, kind: input, shape index: {}]
  %s5 = inlined_call_operand.vmem [shape: f32[4,32], index: 5, kind: input, shape index: {}]
  %s6 = inlined_call_operand.vmem [shape: f32[4,1], index: 6, kind: input, shape index: {}]
  %s7 = inlined_call_operand.hbm [shape: f32[4,200], index: 7, kind: output, shape index: {}]
  %s8 = sld [smem:[#allocation0]]
  $region38: #{tpu_custom_call.1} parent=0
    _
  %s10 = ssub.s32 1, %s8
  %s11 = scalar_select 0, %s10, %s8
  $region1: #{tpu_custom_call.1} parent=0
    #allocation2 [shape = 'u8[4096]{0}', space=vmem, size = 0x1000, scoped, tag = 'output window, operand 0, single buffered']
    #allocation3 [shape = 's32[1]{0}', space=sflag, size = 0x4, scoped, tag = 'scoped memory for tpu_custom_call.1']
    %12 = vsyncpa [#allocation3], 0
    // Predicated region
    $region2: #{tpu_custom_call.1} parent=1 // pred_check
      _
    $region3: #{tpu_custom_call.1} parent=1 // pred_check_branch
      %14 = sbr.rel (0) target = $region5
    $region4: #{tpu_custom_call.1} parent=1 // pred_region
      _
    $region5: #{tpu_custom_call.1} parent=1 // pred_fallthru
      _
    // Predicated region
    $region6: #{tpu_custom_call.1} parent=1 // pred_check
      _
    $region7: #{tpu_custom_call.1} parent=1 // pred_check_branch
      %16 = sbr.rel (0) target = $region9
    $region8: #{tpu_custom_call.1} parent=1 // pred_region
      _
    $region9: #{tpu_custom_call.1} parent=1 // pred_fallthru
      _
    // Predicated region
    $region10: #{tpu_custom_call.1} parent=1 // pred_check
      _
    $region11: #{tpu_custom_call.1} parent=1 // pred_check_branch
      %18 = sbr.rel (0) target = $region13
    $region12: #{tpu_custom_call.1} parent=1 // pred_region
      _
    $region13: #{tpu_custom_call.1} parent=1 // pred_fallthru
      _
    // Predicated region
    $region14: #{tpu_custom_call.1} parent=1 // pred_check
      _
    $region15: #{tpu_custom_call.1} parent=1 // pred_check_branch
      %20 = sbr.rel (0) target = $region17
    $region16: #{tpu_custom_call.1} parent=1 // pred_region
      _
    $region17: #{tpu_custom_call.1} parent=1 // pred_fallthru
      _
    // Predicated region
    $region18: #{tpu_custom_call.1} parent=1 // pred_check
      _
    $region19: #{tpu_custom_call.1} parent=1 // pred_check_branch
      %22 = sbr.rel (0) target = $region21
    $region20: #{tpu_custom_call.1} parent=1 // pred_region
      _
    $region21: #{tpu_custom_call.1} parent=1 // pred_fallthru
      _
    // Predicated region
    $region22: #{tpu_custom_call.1} parent=1 // pred_check
      _
    $region23: #{tpu_custom_call.1} parent=1 // pred_check_branch
      %24 = sbr.rel (0) target = $region25
    $region24: #{tpu_custom_call.1} parent=1 // pred_region
      _
    $region25: #{tpu_custom_call.1} parent=1 // pred_fallthru
      _
    // Predicated region
    $region26: #{tpu_custom_call.1} parent=1 // pred_check
      _
    $region27: #{tpu_custom_call.1} parent=1 // pred_check_branch
      %26 = sbr.rel (0) target = $region29
    $region28: #{tpu_custom_call.1} parent=1 // pred_region
      _
    $region29: #{tpu_custom_call.1} parent=1 // pred_fallthru
      _
    %v27 = vld [vmem:[%s0] sm:$0xff]
    %v28 = vld [vmem:[%s0 + $0x8] sm:$0xff]
    %v29 = vld [vmem:[%s0 + $0x10] sm:$0xff]
    %v30 = vld [vmem:[%s0 + $0x18] sm:$0xff]
    %v31 = vld [vmem:[%s0 + $0x20] sm:$0xff]
    %v32 = vld [vmem:[%s0 + $0x28] sm:$0xff]
    %v33 = vld [vmem:[%s0 + $0x30] sm:$0xff]
    %v34 = vld [vmem:[%s0 + $0x38] sm:$0xff]
    %v35 = vld [vmem:[%s0 + $0x40] sm:$0xff]
    %v36 = vld [vmem:[%s0 + $0x48] sm:$0xff]
    %v37 = vld [vmem:[%s0 + $0x50] sm:$0xff]
    %v38 = vld [vmem:[%s0 + $0x58] sm:$0xff]
    %v39 = vld [vmem:[%s0 + $0x60] sm:$0xff]
    %v40 = vld [vmem:[%s0 + $0x68] sm:$0xff]
    %v41 = vld [vmem:[%s0 + $0x70] sm:$0xff]
    %v42 = vld [vmem:[%s0 + $0x78] sm:$0xff]
    %v43 = vld [vmem:[%s0 + $0x80] sm:$0xff]
    %v44 = vld [vmem:[%s0 + $0x88] sm:$0xff]
    %v45 = vld [vmem:[%s0 + $0x90] sm:$0xff]
    %v46 = vld [vmem:[%s0 + $0x98] sm:$0xff]
    %v47 = vld [vmem:[%s0 + $0xa0] sm:$0xff]
    %v48 = vld [vmem:[%s0 + $0xa8] sm:$0xff]
    %v49 = vld [vmem:[%s0 + $0xb0] sm:$0xff]
    %v50 = vld [vmem:[%s0 + $0xb8] sm:$0xff]
    %v51 = vld [vmem:[%s0 + $0xc0] sm:$0xff]
    %v52 = vld [vmem:[%s1] sm:$0xff]
    %v53 = vld [vmem:[%s1 + $0x8] sm:$0xff]
    %v54 = vld [vmem:[%s1 + $0x10] sm:$0xff]
    %v55 = vld [vmem:[%s1 + $0x18] sm:$0xff]
    %v56 = vld [vmem:[%s1 + $0x20] sm:$0xff]
    %v57 = vld [vmem:[%s1 + $0x28] sm:$0xff]
    %v58 = vld [vmem:[%s1 + $0x30] sm:$0xff]
    %v59 = vld [vmem:[%s1 + $0x38] sm:$0xff]
    %v60 = vld [vmem:[%s2] sm:$0xff]
    %v61 = vld [vmem:[%s2 + $0x8] sm:$0xff]
    %v62 = vld [vmem:[%s2 + $0x10] sm:$0xff]
    %v63 = vld [vmem:[%s2 + $0x18] sm:$0xff]
    %v64 = vld [vmem:[%s2 + $0x20] sm:$0xff]
    %v65 = vld [vmem:[%s2 + $0x28] sm:$0xff]
    %v66 = vld [vmem:[%s2 + $0x30] sm:$0xff]
    %v67 = vld [vmem:[%s2 + $0x38] sm:$0xff]
    %69 = vset.pattern.permute.xlu0 0
    %70 = vperm.xlu0 %69, %v60
    %v71 = vpop.permute.xlu0 %70
    %74 = vset.pattern.permute.xlu0 0
    %75 = vperm.xlu0 %74, %v61
    %v76 = vpop.permute.xlu0 %75
    %79 = vset.pattern.permute.xlu0 0
    %80 = vperm.xlu0 %79, %v62
    %v81 = vpop.permute.xlu0 %80
    %84 = vset.pattern.permute.xlu0 0
    %85 = vperm.xlu0 %84, %v63
    %v86 = vpop.permute.xlu0 %85
    %89 = vset.pattern.permute.xlu0 0
    %90 = vperm.xlu0 %89, %v64
    %v91 = vpop.permute.xlu0 %90
    %94 = vset.pattern.permute.xlu0 0
    %95 = vperm.xlu0 %94, %v65
    %v96 = vpop.permute.xlu0 %95
    %99 = vset.pattern.permute.xlu0 0
    %100 = vperm.xlu0 %99, %v66
    %v101 = vpop.permute.xlu0 %100
    %104 = vset.pattern.permute.xlu0 0
    %105 = vperm.xlu0 %104, %v67
    %v106 = vpop.permute.xlu0 %105
    %vm108 = vcmask 113664
    %v110 = vsel %vm108, %v52, 0
    %v113 = vsel %vm108, %v53, 0
    %v116 = vsel %vm108, %v54, 0
    %v119 = vsel %vm108, %v55, 0
    %v122 = vsel %vm108, %v56, 0
    %v125 = vsel %vm108, %v57, 0
    %v128 = vsel %vm108, %v58, 0
    %v131 = vsel %vm108, %v59, 0
    %v134 = vsel %vm108, %v27, 0
    %v137 = vsel %vm108, %v28, 0
    %v140 = vsel %vm108, %v29, 0
    %v143 = vsel %vm108, %v30, 0
    %v146 = vsel %vm108, %v31, 0
    %v149 = vsel %vm108, %v32, 0
    %v152 = vsel %vm108, %v33, 0
    %v155 = vsel %vm108, %v34, 0
    %v158 = vsel %vm108, %v35, 0
    %v161 = vsel %vm108, %v36, 0
    %v164 = vsel %vm108, %v37, 0
    %v167 = vsel %vm108, %v38, 0
    %v170 = vsel %vm108, %v39, 0
    %v173 = vsel %vm108, %v40, 0
    %v176 = vsel %vm108, %v41, 0
    %v179 = vsel %vm108, %v42, 0
    %v182 = vsel %vm108, %v43, 0
    %v185 = vsel %vm108, %v44, 0
    %v188 = vsel %vm108, %v45, 0
    %v191 = vsel %vm108, %v46, 0
    %v194 = vsel %vm108, %v47, 0
    %v197 = vsel %vm108, %v48, 0
    %v200 = vsel %vm108, %v49, 0
    %v203 = vsel %vm108, %v50, 0
    %v206 = vsel %vm108, %v51, 0
    %208 = vmatprep.subr.mxu0 0.0
    %209 = vmatpush1.xpose.msra.mxu0 %v134
    %210 = vmatprep.subr.mxu0 0.0
    %211 = vmatpush1.xpose.msra.mxu0 %v137
    %212 = vmatprep.subr.mxu0 0.0
    %213 = vmatpush1.xpose.msra.mxu0 %v140
    %214 = vmatprep.subr.mxu0 0.0
    %215 = vmatpush1.xpose.msra.mxu0 %v143
    %216 = vmatprep.subr.mxu0 0.0
    %217 = vmatpush1.xpose.msra.mxu0 %v146
    %218 = vmatprep.subr.mxu0 0.0
    %219 = vmatpush1.xpose.msra.mxu0 %v149
    %220 = vmatprep.subr.mxu0 0.0
    %221 = vmatpush1.xpose.msra.mxu0 %v152
    %222 = vmatprep.subr.mxu0 0.0
    %223 = vmatpush1.xpose.msra.mxu0 %v155
    %224 = vmatprep.subr.mxu0 0.0
    %225 = vmatpush1.xpose.msra.mxu0 %v158
    %226 = vmatprep.subr.mxu0 0.0
    %227 = vmatpush1.xpose.msra.mxu0 %v161
    %228 = vmatprep.subr.mxu0 0.0
    %229 = vmatpush1.xpose.msra.mxu0 %v164
    %230 = vmatprep.subr.mxu0 0.0
    %231 = vmatpush1.xpose.msra.mxu0 %v167
    %232 = vmatprep.subr.mxu0 0.0
    %233 = vmatpush1.xpose.msra.mxu0 %v170
    %234 = vmatprep.subr.mxu0 0.0
    %235 = vmatpush1.xpose.msra.mxu0 %v173
    %236 = vmatprep.subr.mxu0 0.0
    %237 = vmatpush1.xpose.msra.mxu0 %v176
    %238 = vmatprep.subr.mxu0 0.0
    %239 = vmatpush1.xpose.msra.mxu0 %v179
    %240 = vmatprep.subr.mxu0 0.0
    %241 = vmatpush1.xpose.msra.mxu0 %v182
    %242 = vmatprep.subr.mxu0 0.0
    %243 = vmatpush1.xpose.msra.mxu0 %v185
    %244 = vmatprep.subr.mxu0 0.0
    %245 = vmatpush1.xpose.msra.mxu0 %v188
    %246 = vmatprep.subr.mxu0 0.0
    %247 = vmatpush1.xpose.msra.mxu0 %v191
    %248 = vmatprep.subr.mxu0 0.0
    %249 = vmatpush1.xpose.msra.mxu0 %v194
    %250 = vmatprep.subr.mxu0 0.0
    %251 = vmatpush1.xpose.msra.mxu0 %v197
    %252 = vmatprep.subr.mxu0 0.0
    %253 = vmatpush1.xpose.msra.mxu0 %v200
    %254 = vmatprep.subr.mxu0 0.0
    %255 = vmatpush1.xpose.msra.mxu0 %v203
    %256 = vmatprep.subr.mxu0 0.0
    %257 = vmatpush1.xpose.msra.mxu0 %v206
    %258 = vmatprep.subr.mxu0 0.0
    %259 = vmatpush1.xpose.msra.mxu0 0.0
    %260 = vmatprep.subr.mxu0 0.0
    %261 = vmatpush1.xpose.msra.mxu0 0.0
    %262 = vmatprep.subr.mxu0 0.0
    %263 = vmatpush1.xpose.msra.mxu0 0.0
    %264 = vmatprep.subr.mxu0 0.0
    %265 = vmatpush1.xpose.msra.mxu0 0.0
    %266 = vmatprep.subr.mxu0 0.0
    %267 = vmatpush1.xpose.msra.mxu0 0.0
    %268 = vmatprep.subr.mxu0 0.0
    %269 = vmatpush1.xpose.msra.mxu0 0.0
    %270 = vmatprep.subr.mxu0 0.0
    %271 = vmatpush1.xpose.msra.mxu0 0.0
    %272 = vmatprep.mubr.f32.mxu0 0.0
    %273 = vmatmul.mubr.f32.gmra.mrb[0].mxu0 %v110
    %v274 = vpop.f32.mrb[0].mxu0
    %v275 = vadd.f32 %v71, %v274
    %v276 = vpop.f32.mrb[0].mxu0
    %v277 = vadd.f32 %v71, %v276
    %278 = vmatprep.mubr.f32.mxu0 0.0
    %279 = vmatmul.mubr.f32.gmra.mrb[0].mxu0 %v113
    %v280 = vpop.f32.mrb[0].mxu0
    %v281 = vadd.f32 %v76, %v280
    %v282 = vpop.f32.mrb[0].mxu0
    %v283 = vadd.f32 %v76, %v282
    %284 = vmatprep.mubr.f32.mxu0 0.0
    %285 = vmatmul.mubr.f32.gmra.mrb[0].mxu0 %v116
    %v286 = vpop.f32.mrb[0].mxu0
    %v287 = vadd.f32 %v81, %v286
    %v288 = vpop.f32.mrb[0].mxu0
    %v289 = vadd.f32 %v81, %v288
    %290 = vmatprep.mubr.f32.mxu0 0.0
    %291 = vmatmul.mubr.f32.gmra.mrb[0].mxu0 %v119
    %v292 = vpop.f32.mrb[0].mxu0
    %v293 = vadd.f32 %v86, %v292
    %v294 = vpop.f32.mrb[0].mxu0
    %v295 = vadd.f32 %v86, %v294
    %296 = vmatprep.mubr.f32.mxu0 0.0
    %297 = vmatmul.mubr.f32.gmra.mrb[0].mxu0 %v122
    %v298 = vpop.f32.mrb[0].mxu0
    %v299 = vadd.f32 %v91, %v298
    %v300 = vpop.f32.mrb[0].mxu0
    %v301 = vadd.f32 %v91, %v300
    %302 = vmatprep.mubr.f32.mxu0 0.0
    %303 = vmatmul.mubr.f32.gmra.mrb[0].mxu0 %v125
    %v304 = vpop.f32.mrb[0].mxu0
    %v305 = vadd.f32 %v96, %v304
    %v306 = vpop.f32.mrb[0].mxu0
    %v307 = vadd.f32 %v96, %v306
    %308 = vmatprep.mubr.f32.mxu0 0.0
    %309 = vmatmul.mubr.f32.gmra.mrb[0].mxu0 %v128
    %v310 = vpop.f32.mrb[0].mxu0
    %v311 = vadd.f32 %v101, %v310
    %v312 = vpop.f32.mrb[0].mxu0
    %v313 = vadd.f32 %v101, %v312
    %314 = vmatprep.mubr.f32.mxu0 0.0
    %315 = vmatmul.mubr.f32.gmra.mrb[0].mxu0 %v131
    %v316 = vpop.f32.mrb[0].mxu0
    %v317 = vadd.f32 %v106, %v316
    %v318 = vpop.f32.mrb[0].mxu0
    %v319 = vadd.f32 %v106, %v318
    %320 = vdwg.mxu0
    %v321 = vmax.f32 %v275, 0.0
    %v322 = vmax.f32 %v277, 0.0
    %v323 = vmax.f32 %v281, 0.0
    %v324 = vmax.f32 %v283, 0.0
    %v325 = vmax.f32 %v287, 0.0
    %v326 = vmax.f32 %v289, 0.0
    %v327 = vmax.f32 %v293, 0.0
    %v328 = vmax.f32 %v295, 0.0
    %v329 = vmax.f32 %v299, 0.0
    %v330 = vmax.f32 %v301, 0.0
    %v331 = vmax.f32 %v305, 0.0
    %v332 = vmax.f32 %v307, 0.0
    %v333 = vmax.f32 %v311, 0.0
    %v334 = vmax.f32 %v313, 0.0
    %v335 = vmax.f32 %v317, 0.0
    %v336 = vmax.f32 %v319, 0.0
    %v337 = vld [vmem:[%s3] sm:$0xff]
    %v338 = vld [vmem:[%s3 + $0x8] sm:$0xff]
    %v339 = vld [vmem:[%s3 + $0x10] sm:$0xff]
    %v340 = vld [vmem:[%s3 + $0x18] sm:$0xff]
    %v341 = vld [vmem:[%s4] sm:$0xff]
    %v342 = vld [vmem:[%s4 + $0x8] sm:$0xff]
    %v343 = vld [vmem:[%s4 + $0x10] sm:$0xff]
    %v344 = vld [vmem:[%s4 + $0x18] sm:$0xff]
    %346 = vset.pattern.permute.xlu0 0
    %347 = vperm.xlu0 %346, %v341
    %v348 = vpop.permute.xlu0 %347
    %351 = vset.pattern.permute.xlu0 0
    %352 = vperm.xlu0 %351, %v342
    %v353 = vpop.permute.xlu0 %352
    %356 = vset.pattern.permute.xlu0 0
    %357 = vperm.xlu0 %356, %v343
    %v358 = vpop.permute.xlu0 %357
    %361 = vset.pattern.permute.xlu0 0
    %362 = vperm.xlu0 %361, %v344
    %v363 = vpop.permute.xlu0 %362
    %vm365 = vcmask 523264
    %v367 = vsel %vm365, %v337, 0
    %v370 = vsel %vm365, %v338, 0
    %v373 = vsel %vm365, %v339, 0
    %v376 = vsel %vm365, %v340, 0
    %378 = vmatprep.subr.mxu0 %v322
    %379 = vmatpush1.msra.mxu0 %v321
    %380 = vmatprep.subr.mxu0 %v324
    %381 = vmatpush1.msra.mxu0 %v323
    %382 = vmatprep.subr.mxu0 %v326
    %383 = vmatpush1.msra.mxu0 %v325
    %384 = vmatprep.subr.mxu0 %v328
    %385 = vmatpush1.msra.mxu0 %v327
    %386 = vmatprep.subr.mxu0 %v330
    %387 = vmatpush1.msra.mxu0 %v329
    %388 = vmatprep.subr.mxu0 %v332
    %389 = vmatpush1.msra.mxu0 %v331
    %390 = vmatprep.subr.mxu0 %v334
    %391 = vmatpush1.msra.mxu0 %v333
    %392 = vmatprep.subr.mxu0 %v336
    %393 = vmatpush1.msra.mxu0 %v335
    %394 = vmatprep.subr.mxu0 0.0
    %395 = vmatpush1.msra.mxu0 0.0
    %396 = vmatprep.subr.mxu0 0.0
    %397 = vmatpush1.msra.mxu0 0.0
    %398 = vmatprep.subr.mxu0 0.0
    %399 = vmatpush1.msra.mxu0 0.0
    %400 = vmatprep.subr.mxu0 0.0
    %401 = vmatpush1.msra.mxu0 0.0
    %402 = vmatprep.subr.mxu0 0.0
    %403 = vmatpush1.msra.mxu0 0.0
    %404 = vmatprep.subr.mxu0 0.0
    %405 = vmatpush1.msra.mxu0 0.0
    %406 = vmatprep.subr.mxu0 0.0
    %407 = vmatpush1.msra.mxu0 0.0
    %408 = vmatprep.subr.mxu0 0.0
    %409 = vmatpush1.msra.mxu0 0.0
    %410 = vmatprep.subr.mxu0 0.0
    %411 = vmatpush1.msra.mxu0 0.0
    %412 = vmatprep.subr.mxu0 0.0
    %413 = vmatpush1.msra.mxu0 0.0
    %414 = vmatprep.subr.mxu0 0.0
    %415 = vmatpush1.msra.mxu0 0.0
    %416 = vmatprep.subr.mxu0 0.0
    %417 = vmatpush1.msra.mxu0 0.0
    %418 = vmatprep.subr.mxu0 0.0
    %419 = vmatpush1.msra.mxu0 0.0
    %420 = vmatprep.subr.mxu0 0.0
    %421 = vmatpush1.msra.mxu0 0.0
    %422 = vmatprep.subr.mxu0 0.0
    %423 = vmatpush1.msra.mxu0 0.0
    %424 = vmatprep.subr.mxu0 0.0
    %425 = vmatpush1.msra.mxu0 0.0
    %426 = vmatprep.subr.mxu0 0.0
    %427 = vmatpush1.msra.mxu0 0.0
    %428 = vmatprep.subr.mxu0 0.0
    %429 = vmatpush1.msra.mxu0 0.0
    %430 = vmatprep.subr.mxu0 0.0
    %431 = vmatpush1.msra.mxu0 0.0
    %432 = vmatprep.subr.mxu0 0.0
    %433 = vmatpush1.msra.mxu0 0.0
    %434 = vmatprep.subr.mxu0 0.0
    %435 = vmatpush1.msra.mxu0 0.0
    %436 = vmatprep.subr.mxu0 0.0
    %437 = vmatpush1.msra.mxu0 0.0
    %438 = vmatprep.subr.mxu0 0.0
    %439 = vmatpush1.msra.mxu0 0.0
    %440 = vmatprep.subr.mxu0 0.0
    %441 = vmatpush1.msra.mxu0 0.0
    %442 = vmatprep.mubr.f32.mxu0 0.0
    %443 = vmatmul.mubr.f32.gmra.mrb[0].mxu0 %v367
    %v444 = vpop.f32.mrb[0].mxu0
    %v445 = vadd.f32 %v348, %v444
    %v446 = vpop.f32.mrb[0].mxu0
    %v447 = vadd.f32 %v348, %v446
    %448 = vmatprep.mubr.f32.mxu0 0.0
    %449 = vmatmul.mubr.f32.gmra.mrb[0].mxu0 %v370
    %v450 = vpop.f32.mrb[0].mxu0
    %v451 = vadd.f32 %v353, %v450
    %v452 = vpop.f32.mrb[0].mxu0
    %v453 = vadd.f32 %v353, %v452
    %454 = vmatprep.mubr.f32.mxu0 0.0
    %455 = vmatmul.mubr.f32.gmra.mrb[0].mxu0 %v373
    %v456 = vpop.f32.mrb[0].mxu0
    %v457 = vadd.f32 %v358, %v456
    %v458 = vpop.f32.mrb[0].mxu0
    %v459 = vadd.f32 %v358, %v458
    %460 = vmatprep.mubr.f32.mxu0 0.0
    %461 = vmatmul.mubr.f32.gmra.mrb[0].mxu0 %v376
    %v462 = vpop.f32.mrb[0].mxu0
    %v463 = vadd.f32 %v363, %v462
    %v464 = vpop.f32.mrb[0].mxu0
    %v465 = vadd.f32 %v363, %v464
    %466 = vdwg.mxu0
    %v467 = vmax.f32 %v445, 0.0
    %v468 = vmax.f32 %v447, 0.0
    %v469 = vmax.f32 %v451, 0.0
    %v470 = vmax.f32 %v453, 0.0
    %v471 = vmax.f32 %v457, 0.0
    %v472 = vmax.f32 %v459, 0.0
    %v473 = vmax.f32 %v463, 0.0
    %v474 = vmax.f32 %v465, 0.0
    %v475 = vld [vmem:[%s5] sm:$0xf]
    %v476 = vld [vmem:[%s6] sm:$0xf]
    %478 = vset.pattern.permute.xlu0 0
    %479 = vperm.xlu0 %478, %v476
    %v480 = vpop.permute.xlu0 %479
    %vm482 = vcmask 261120
    %v484 = vsel %vm482, %v475, 0
    %486 = vmatprep.subr.mxu0 %v468
    %487 = vmatpush1.msra.mxu0 %v467
    %488 = vmatprep.subr.mxu0 %v470
    %489 = vmatpush1.msra.mxu0 %v469
    %490 = vmatprep.subr.mxu0 %v472
    %491 = vmatpush1.msra.mxu0 %v471
    %492 = vmatprep.subr.mxu0 %v474
    %493 = vmatpush1.msra.mxu0 %v473
    %494 = vmatprep.subr.mxu0 0.0
    %495 = vmatpush1.msra.mxu0 0.0
    %496 = vmatprep.subr.mxu0 0.0
    %497 = vmatpush1.msra.mxu0 0.0
    %498 = vmatprep.subr.mxu0 0.0
    %499 = vmatpush1.msra.mxu0 0.0
    %500 = vmatprep.subr.mxu0 0.0
    %501 = vmatpush1.msra.mxu0 0.0
    %502 = vmatprep.subr.mxu0 0.0
    %503 = vmatpush1.msra.mxu0 0.0
    %504 = vmatprep.subr.mxu0 0.0
    %505 = vmatpush1.msra.mxu0 0.0
    %506 = vmatprep.subr.mxu0 0.0
    %507 = vmatpush1.msra.mxu0 0.0
    %508 = vmatprep.subr.mxu0 0.0
    %509 = vmatpush1.msra.mxu0 0.0
    %510 = vmatprep.subr.mxu0 0.0
    %511 = vmatpush1.msra.mxu0 0.0
    %512 = vmatprep.subr.mxu0 0.0
    %513 = vmatpush1.msra.mxu0 0.0
    %514 = vmatprep.subr.mxu0 0.0
    %515 = vmatpush1.msra.mxu0 0.0
    %516 = vmatprep.subr.mxu0 0.0
    %517 = vmatpush1.msra.mxu0 0.0
    %518 = vmatprep.subr.mxu0 0.0
    %519 = vmatpush1.msra.mxu0 0.0
    %520 = vmatprep.subr.mxu0 0.0
    %521 = vmatpush1.msra.mxu0 0.0
    %522 = vmatprep.subr.mxu0 0.0
    %523 = vmatpush1.msra.mxu0 0.0
    %524 = vmatprep.subr.mxu0 0.0
    %525 = vmatpush1.msra.mxu0 0.0
    %526 = vmatprep.subr.mxu0 0.0
    %527 = vmatpush1.msra.mxu0 0.0
    %528 = vmatprep.subr.mxu0 0.0
    %529 = vmatpush1.msra.mxu0 0.0
    %530 = vmatprep.subr.mxu0 0.0
    %531 = vmatpush1.msra.mxu0 0.0
    %532 = vmatprep.subr.mxu0 0.0
    %533 = vmatpush1.msra.mxu0 0.0
    %534 = vmatprep.subr.mxu0 0.0
    %535 = vmatpush1.msra.mxu0 0.0
    %536 = vmatprep.subr.mxu0 0.0
    %537 = vmatpush1.msra.mxu0 0.0
    %538 = vmatprep.subr.mxu0 0.0
    %539 = vmatpush1.msra.mxu0 0.0
    %540 = vmatprep.subr.mxu0 0.0
    %541 = vmatpush1.msra.mxu0 0.0
    %542 = vmatprep.subr.mxu0 0.0
    %543 = vmatpush1.msra.mxu0 0.0
    %544 = vmatprep.subr.mxu0 0.0
    %545 = vmatpush1.msra.mxu0 0.0
    %546 = vmatprep.subr.mxu0 0.0
    %547 = vmatpush1.msra.mxu0 0.0
    %548 = vmatprep.subr.mxu0 0.0
    %549 = vmatpush1.msra.mxu0 0.0
    %550 = vmatprep.mubr.f32.mxu0 0.0
    %551 = vmatmul.mubr.f32.gmra.mrb[0].mxu0 %v484
    %v552 = vpop.f32.mrb[0].mxu0
    %v553 = vadd.f32 %v480, %v552
    %v554 = vpop.f32.mrb[0].mxu0
    %v555 = vadd.f32 %v480, %v554
    %556 = vdwg.mxu0
    %v557 = vxor.u32 %v553, 2147483648
    %v558 = vxor.u32 %v555, 2147483648
    %v559 = vmul.f32 %v557, 1.442695
    %v560 = vpow.pop %v559
    %v561 = vmul.f32 %v558, 1.442695
    %v562 = vpow.pop %v561
    %v563 = vadd.f32 %v560, 1.0
    %v564 = vadd.f32 %v562, 1.0
    %v565 = vrcp.pop %v563
    %v566 = vmul.f32 1.0, %v565
    %v567 = vrcp.pop %v564
    %v568 = vmul.f32 1.0, %v567
    %v571 = vcombine.low %v566, %v568
    %vm573 = vcmask 1043456
    %vm574 = vcmask 588804
    %vm575 = vmor %vm574, %vm573
    %576 = vst.msk [vmem:[#allocation2] sm:$0xff] %vm575, %v571
    // Predicated region
    $region30: #{tpu_custom_call.1} parent=1 // pred_check
      _
    $region31: #{tpu_custom_call.1} parent=1 // pred_check_branch
      %578 = sbr.rel (0) target = $region33
    $region32: #{tpu_custom_call.1} parent=1 // pred_region
      %s580 = ssub.s32 128, 128
      %581 = vsyncadd [#allocation3], %s580
      %s583 = sshll.u32 [#allocation2], 4
      %s584 = int_to_ptr.vmem [resolvable:$true] %s583
      %586 = dma.vmem_to_hbm [thread:$0]  %s584, 128, %s7, [#allocation3]
    $region33: #{tpu_custom_call.1} parent=1 // pred_fallthru
      _
    // Predicated region
    $region34: #{tpu_custom_call.1} parent=1 // pred_check
      _
    $region35: #{tpu_custom_call.1} parent=1 // pred_check_branch
      %588 = sbr.rel (0) target = $region37
    $region36: #{tpu_custom_call.1} parent=1 // pred_region
      %589 = dma.done [#allocation3], 128
    $region37: #{tpu_custom_call.1} parent=1 // pred_fallthru
      _
    %590 = vsyncpa [#allocation3], 1

</llo_original>
